<compile_context>
chip_gen: v5e
topology: v5e:2x2
jax: 0.10.0
libtpu: 0.0.40
codegen_flags: <defaults>
</compile_context>

<pallas_src>
import jax
import jax.numpy as jnp
import numpy as np
from jax.experimental import pallas as pl
from jax.experimental.pallas import tpu as pltpu

# Small, forward-consistent dims
VOCAB = 50
EMBED = 32
HIDDEN = 32          # 4*HIDDEN = 128 -> lane-aligned gate math
OUT = 2
BATCH = 2
SEQ = 8

IN_PAD = 40          # EMBED + 1 (bias column) rounded up to a multiple of 8
OUT_PAD = 128        # lane-dense FC output; sliced to OUT in the wrapper


def nli_kernel(x_ref, w_ref, fc_ref, out_ref):
    # x_ref : (T, 4B, IN_PAD)  stacked streams [q_fwd | s_fwd | q_bwd | s_bwd],
    #         backward streams already time-reversed; col EMBED is 1.0 (bias).
    # w_ref : (H + IN_PAD, 2*4H)  rows [0,H) = [w_hh_fwd | w_hh_bwd],
    #         rows [H, H+IN_PAD) = [w_ih_fwd | w_ih_bwd] with bias row + zero pad.
    # fc_ref: (2H + 8, OUT_PAD)  rows [0,2H) = fc weight (lane-padded),
    #         row 2H = fc bias, rest zero.
    T, R, EA = x_ref.shape
    H = HIDDEN
    G = 4 * H
    B = R // 4

    w_all = w_ref[...]
    w_hh = w_all[0:H, :]                       # (H, 2G)
    w_ih = w_all[H:H + EA, :]                  # (EA, 2G)  (bias folded in)

    # Hoisted input projection for every timestep / stream: one MXU call.
    x_flat = x_ref[...].reshape(T * R, EA)
    proj = jnp.dot(x_flat, w_ih, preferred_element_type=jnp.float32)   # (T*R, 2G)
    proj = proj.reshape(T, R, 2 * G)

    # Rows [0, 2B) are forward-direction streams -> lanes [0, G); rest backward.
    is_fwd = jax.lax.broadcasted_iota(jnp.int32, (R, G), 0) < 2 * B    # (R, G)
    xproj = jnp.where(is_fwd[None], proj[:, :, :G], proj[:, :, G:])    # (T, R, G)

    h = jnp.zeros((R, H), jnp.float32)
    c = jnp.zeros((R, H), jnp.float32)
    for t in range(T):                          # static trip count -> fully unrolled
        rec = jnp.dot(h, w_hh, preferred_element_type=jnp.float32)     # (R, 2G)
        gates = xproj[t] + jnp.where(is_fwd, rec[:, :G], rec[:, G:])   # (R, G)
        sg = jax.nn.sigmoid(gates)              # one EUP pass: i | f | . | o lanes
        tg = jnp.tanh(gates)                    # one EUP pass: g lanes
        c = sg[:, H:2 * H] * c + sg[:, 0:H] * tg[:, 2 * H:3 * H]
        h = sg[:, 3 * H:4 * H] * jnp.tanh(c)

    # Final hidden per stream; row layout [q_fwd | s_fwd | q_bwd | s_bwd].
    q_h = jnp.concatenate([h[0:B], h[2 * B:3 * B]], axis=1)            # (B, 2H)
    s_h = jnp.concatenate([h[B:2 * B], h[3 * B:4 * B]], axis=1)        # (B, 2H)
    combined = q_h * s_h

    fc = fc_ref[...]
    out_ref[...] = (jnp.dot(combined, fc[0:2 * H, :],
                            preferred_element_type=jnp.float32)
                    + fc[2 * H:2 * H + 1, :])


def init_params(key):
    ks = jax.random.split(key, 7)
    emb = jax.random.normal(ks[0], (VOCAB, EMBED), jnp.float32) * 0.1
    emb = emb.at[0].set(0.0)        # padding_idx=0 -> zero row
    w_ih = jax.random.normal(ks[1], (2, EMBED, 4 * HIDDEN), jnp.float32) * 0.1
    w_hh = jax.random.normal(ks[2], (2, HIDDEN, 4 * HIDDEN), jnp.float32) * 0.1
    b_ih = jax.random.normal(ks[3], (2, 1, 4 * HIDDEN), jnp.float32) * 0.1
    b_hh = jax.random.normal(ks[4], (2, 1, 4 * HIDDEN), jnp.float32) * 0.1
    fc_w = jax.random.normal(ks[5], (2 * HIDDEN, OUT), jnp.float32) * 0.1
    fc_b = jax.random.normal(ks[6], (1, OUT), jnp.float32) * 0.1
    return dict(embedding=emb, w_ih=w_ih, w_hh=w_hh, b=b_ih + b_hh,
                fc_w=fc_w, fc_b=fc_b)


def pack_params(p):
    """One-time packing of the small parameter tensors into lane-dense inputs."""
    H, E, G = HIDDEN, EMBED, 4 * HIDDEN
    w_ih_cat = jnp.concatenate([p["w_ih"][0], p["w_ih"][1]], axis=1)   # (E, 2G)
    b_cat = jnp.concatenate([p["b"][0], p["b"][1]], axis=1)            # (1, 2G)
    pad = jnp.zeros((IN_PAD - E - 1, 2 * G), jnp.float32)
    w_ih_aug = jnp.concatenate([w_ih_cat, b_cat, pad], axis=0)         # (IN_PAD, 2G)
    w_hh_cat = jnp.concatenate([p["w_hh"][0], p["w_hh"][1]], axis=1)   # (H, 2G)
    w_pack = jnp.concatenate([w_hh_cat, w_ih_aug], axis=0)             # (H+IN_PAD, 2G)

    fc_w_pad = jnp.zeros((2 * H, OUT_PAD), jnp.float32).at[:, :OUT].set(p["fc_w"])
    fc_b_pad = jnp.zeros((1, OUT_PAD), jnp.float32).at[:, :OUT].set(p["fc_b"])
    fc_tail = jnp.zeros((7, OUT_PAD), jnp.float32)
    fc_pack = jnp.concatenate([fc_w_pad, fc_b_pad, fc_tail], axis=0)   # (2H+8, OUT_PAD)
    return dict(embedding=p["embedding"], w_pack=w_pack, fc_pack=fc_pack)


def nli_forward(question, sentence, packed):
    # Embedding lookup (irregular gather) stays in plain JAX.
    B, Tq = question.shape
    Ts = sentence.shape[1]
    assert Tq == Ts, "fused kernel stacks q/s streams; pad to a common length"
    # TODO(synk): unequal question/sentence lengths would need length masking or
    # separate recurrences; this matches the torch model only for equal padded T.
    T = Tq

    emb = packed["embedding"]
    q_tm = jnp.transpose(jnp.take(emb, question, axis=0), (1, 0, 2)).astype(jnp.float32)
    s_tm = jnp.transpose(jnp.take(emb, sentence, axis=0), (1, 0, 2)).astype(jnp.float32)
    # Stream stacking along batch: [q_fwd | s_fwd | q_bwd(rev) | s_bwd(rev)].
    x = jnp.concatenate([q_tm, s_tm, q_tm[::-1], s_tm[::-1]], axis=1)  # (T, 4B, E)
    ones = jnp.ones((T, 4 * B, 1), jnp.float32)                        # bias column
    zpad = jnp.zeros((T, 4 * B, IN_PAD - EMBED - 1), jnp.float32)
    x_aug = jnp.concatenate([x, ones, zpad], axis=-1)                  # (T, 4B, IN_PAD)

    vmem = pl.BlockSpec(memory_space=pltpu.MemorySpace.VMEM)
    out = pl.pallas_call(
        nli_kernel,
        out_shape=jax.ShapeDtypeStruct((B, OUT_PAD), jnp.float32),
        in_specs=[vmem, vmem, vmem],
        out_specs=vmem,
    )(x_aug, packed["w_pack"], packed["fc_pack"])
    return out[:, :OUT]


# --- pure-JAX reference (mirrors torch semantics) for a correctness check ---
def _lstm_ref_dir(x, w_ih, w_hh, b, reverse):
    B, T, _ = x.shape
    h = jnp.zeros((B, HIDDEN), jnp.float32)
    c = jnp.zeros((B, HIDDEN), jnp.float32)
    steps = range(T - 1, -1, -1) if reverse else range(T)
    for t in steps:
        gates = x[:, t, :] @ w_ih + h @ w_hh + b
        i = jax.nn.sigmoid(gates[:, :HIDDEN])
        f = jax.nn.sigmoid(gates[:, HIDDEN:2 * HIDDEN])
        g = jnp.tanh(gates[:, 2 * HIDDEN:3 * HIDDEN])
        o = jax.nn.sigmoid(gates[:, 3 * HIDDEN:])
        c = f * c + i * g
        h = o * jnp.tanh(c)
    return h


def ref_forward(question, sentence, p):
    def bilstm(ids):
        x = jnp.take(p["embedding"], ids, axis=0)
        hf = _lstm_ref_dir(x, p["w_ih"][0], p["w_hh"][0], p["b"][0], False)
        hb = _lstm_ref_dir(x, p["w_ih"][1], p["w_hh"][1], p["b"][1], True)
        return jnp.concatenate([hf, hb], axis=1)
    combined = bilstm(question) * bilstm(sentence)
    return combined @ p["fc_w"] + p["fc_b"]


if __name__ == "__main__":
    key = jax.random.PRNGKey(0)
    kq, ks, kp = jax.random.split(key, 3)
    question = jax.random.randint(kq, (BATCH, SEQ), 0, VOCAB, dtype=jnp.int32)
    sentence = jax.random.randint(ks, (BATCH, SEQ), 0, VOCAB, dtype=jnp.int32)
    params = init_params(kp)
    packed = pack_params(params)          # one-time parameter packing

    out = jax.block_until_ready(nli_forward(question, sentence, packed))
    ref = jax.block_until_ready(ref_forward(question, sentence, params))

    assert out.shape == (BATCH, OUT)
    np.testing.assert_allclose(np.asarray(out), np.asarray(ref), atol=1e-4, rtol=1e-4)
    print("KERNEL_OK")
</pallas_src>

<mosaic_0001>
module attributes {stable_mosaic.version = 11 : i64} {
  func.func @nli_kernel(%arg0: memref<8x8x40xf32, #tpu.memory_space<vmem>>, %arg1: memref<72x256xf32, #tpu.memory_space<vmem>>, %arg2: memref<72x128xf32, #tpu.memory_space<vmem>>, %arg3: memref<2x128xf32, #tpu.memory_space<vmem>>) attributes {dimension_semantics = [], scalar_prefetch = 0 : i64, scratch_operands = 0 : i64, tpu.core_type = #tpu.core_type<tc>} {
    %c0 = arith.constant 0 : index
    %c0_0 = arith.constant 0 : index
    %0 = vector.load %arg1[%c0, %c0_0] : memref<72x256xf32, #tpu.memory_space<vmem>>, vector<72x256xf32>
    %1 = vector.extract_strided_slice %0 {offsets = [0, 0], sizes = [32, 256], strides = [1, 1]} : vector<72x256xf32> to vector<32x256xf32>
    %2 = vector.extract_strided_slice %0 {offsets = [32, 0], sizes = [40, 256], strides = [1, 1]} : vector<72x256xf32> to vector<40x256xf32>
    %c0_1 = arith.constant 0 : index
    %c0_2 = arith.constant 0 : index
    %c0_3 = arith.constant 0 : index
    %3 = vector.load %arg0[%c0_1, %c0_2, %c0_3] : memref<8x8x40xf32, #tpu.memory_space<vmem>>, vector<8x8x40xf32>
    %4 = vector.shape_cast %3 : vector<8x8x40xf32> to vector<64x40xf32>
    %cst = arith.constant dense<0.000000e+00> : vector<64x256xf32>
    %5 = tpu.matmul %4, %2, %cst {dimension_numbers = #tpu.dot_dimension_numbers<[1], [0], [0], [1], [0, 0, 1, 1], [], []>} : vector<64x40xf32>, vector<40x256xf32>, vector<64x256xf32> -> vector<64x256xf32>
    %6 = vector.shape_cast %5 : vector<64x256xf32> to vector<8x8x256xf32>
    %7 = tpu.iota {dimensions = array<i32: 0>} : vector<8x128xi32>
    %c4_i32 = arith.constant 4 : i32
    %8 = vector.broadcast %c4_i32 : i32 to vector<8x128xi32>
    %9 = arith.cmpi slt, %7, %8 : vector<8x128xi32>
    %10 = vector.shape_cast %9 : vector<8x128xi1> to vector<1x8x128xi1>
    %11 = vector.extract_strided_slice %6 {offsets = [0, 0, 0], sizes = [8, 8, 128], strides = [1, 1, 1]} : vector<8x8x256xf32> to vector<8x8x128xf32>
    %12 = vector.extract_strided_slice %6 {offsets = [0, 0, 128], sizes = [8, 8, 128], strides = [1, 1, 1]} : vector<8x8x256xf32> to vector<8x8x128xf32>
    %13 = vector.shape_cast %10 : vector<1x8x128xi1> to vector<1x8x128xi1>
    %14 = vector.broadcast %13 : vector<1x8x128xi1> to vector<8x8x128xi1>
    %15 = arith.select %14, %11, %12 : vector<8x8x128xi1>, vector<8x8x128xf32>
    %cst_4 = arith.constant 0.000000e+00 : f32
    %16 = vector.broadcast %cst_4 : f32 to vector<8x32xf32>
    %cst_5 = arith.constant 0.000000e+00 : f32
    %17 = vector.broadcast %cst_5 : f32 to vector<8x32xf32>
    %cst_6 = arith.constant dense<0.000000e+00> : vector<8x256xf32>
    %18 = tpu.matmul %16, %1, %cst_6 {dimension_numbers = #tpu.dot_dimension_numbers<[1], [0], [0], [1], [0, 0, 1, 1], [], []>} : vector<8x32xf32>, vector<32x256xf32>, vector<8x256xf32> -> vector<8x256xf32>
    %19 = vector.extract_strided_slice %15 {offsets = [0, 0, 0], sizes = [1, 8, 128], strides = [1, 1, 1]} : vector<8x8x128xf32> to vector<1x8x128xf32>
    %20 = vector.shape_cast %19 : vector<1x8x128xf32> to vector<8x128xf32>
    %21 = vector.extract_strided_slice %18 {offsets = [0, 0], sizes = [8, 128], strides = [1, 1]} : vector<8x256xf32> to vector<8x128xf32>
    %22 = vector.extract_strided_slice %18 {offsets = [0, 128], sizes = [8, 128], strides = [1, 1]} : vector<8x256xf32> to vector<8x128xf32>
    %23 = arith.select %9, %21, %22 : vector<8x128xi1>, vector<8x128xf32>
    %24 = arith.addf %20, %23 : vector<8x128xf32>
    %25 = arith.negf %24 : vector<8x128xf32>
    %26 = math.exp %25 : vector<8x128xf32>
    %cst_7 = arith.constant 1.000000e+00 : f32
    %27 = vector.broadcast %cst_7 : f32 to vector<8x128xf32>
    %28 = arith.addf %27, %26 : vector<8x128xf32>
    %29 = arith.divf %27, %28 : vector<8x128xf32>
    %30 = math.tanh %24 : vector<8x128xf32>
    %31 = vector.extract_strided_slice %29 {offsets = [0, 32], sizes = [8, 32], strides = [1, 1]} : vector<8x128xf32> to vector<8x32xf32>
    %32 = arith.mulf %31, %17 : vector<8x32xf32>
    %33 = vector.extract_strided_slice %29 {offsets = [0, 0], sizes = [8, 32], strides = [1, 1]} : vector<8x128xf32> to vector<8x32xf32>
    %34 = vector.extract_strided_slice %30 {offsets = [0, 64], sizes = [8, 32], strides = [1, 1]} : vector<8x128xf32> to vector<8x32xf32>
    %35 = arith.mulf %33, %34 : vector<8x32xf32>
    %36 = arith.addf %32, %35 : vector<8x32xf32>
    %37 = vector.extract_strided_slice %29 {offsets = [0, 96], sizes = [8, 32], strides = [1, 1]} : vector<8x128xf32> to vector<8x32xf32>
    %38 = math.tanh %36 : vector<8x32xf32>
    %39 = arith.mulf %37, %38 : vector<8x32xf32>
    %cst_8 = arith.constant dense<0.000000e+00> : vector<8x256xf32>
    %40 = tpu.matmul %39, %1, %cst_8 {dimension_numbers = #tpu.dot_dimension_numbers<[1], [0], [0], [1], [0, 0, 1, 1], [], []>} : vector<8x32xf32>, vector<32x256xf32>, vector<8x256xf32> -> vector<8x256xf32>
    %41 = vector.extract_strided_slice %15 {offsets = [1, 0, 0], sizes = [1, 8, 128], strides = [1, 1, 1]} : vector<8x8x128xf32> to vector<1x8x128xf32>
    %42 = vector.shape_cast %41 : vector<1x8x128xf32> to vector<8x128xf32>
    %43 = vector.extract_strided_slice %40 {offsets = [0, 0], sizes = [8, 128], strides = [1, 1]} : vector<8x256xf32> to vector<8x128xf32>
    %44 = vector.extract_strided_slice %40 {offsets = [0, 128], sizes = [8, 128], strides = [1, 1]} : vector<8x256xf32> to vector<8x128xf32>
    %45 = arith.select %9, %43, %44 : vector<8x128xi1>, vector<8x128xf32>
    %46 = arith.addf %42, %45 : vector<8x128xf32>
    %47 = arith.negf %46 : vector<8x128xf32>
    %48 = math.exp %47 : vector<8x128xf32>
    %cst_9 = arith.constant 1.000000e+00 : f32
    %49 = vector.broadcast %cst_9 : f32 to vector<8x128xf32>
    %50 = arith.addf %49, %48 : vector<8x128xf32>
    %51 = arith.divf %49, %50 : vector<8x128xf32>
    %52 = math.tanh %46 : vector<8x128xf32>
    %53 = vector.extract_strided_slice %51 {offsets = [0, 32], sizes = [8, 32], strides = [1, 1]} : vector<8x128xf32> to vector<8x32xf32>
    %54 = arith.mulf %53, %36 : vector<8x32xf32>
    %55 = vector.extract_strided_slice %51 {offsets = [0, 0], sizes = [8, 32], strides = [1, 1]} : vector<8x128xf32> to vector<8x32xf32>
    %56 = vector.extract_strided_slice %52 {offsets = [0, 64], sizes = [8, 32], strides = [1, 1]} : vector<8x128xf32> to vector<8x32xf32>
    %57 = arith.mulf %55, %56 : vector<8x32xf32>
    %58 = arith.addf %54, %57 : vector<8x32xf32>
    %59 = vector.extract_strided_slice %51 {offsets = [0, 96], sizes = [8, 32], strides = [1, 1]} : vector<8x128xf32> to vector<8x32xf32>
    %60 = math.tanh %58 : vector<8x32xf32>
    %61 = arith.mulf %59, %60 : vector<8x32xf32>
    %cst_10 = arith.constant dense<0.000000e+00> : vector<8x256xf32>
    %62 = tpu.matmul %61, %1, %cst_10 {dimension_numbers = #tpu.dot_dimension_numbers<[1], [0], [0], [1], [0, 0, 1, 1], [], []>} : vector<8x32xf32>, vector<32x256xf32>, vector<8x256xf32> -> vector<8x256xf32>
    %63 = vector.extract_strided_slice %15 {offsets = [2, 0, 0], sizes = [1, 8, 128], strides = [1, 1, 1]} : vector<8x8x128xf32> to vector<1x8x128xf32>
    %64 = vector.shape_cast %63 : vector<1x8x128xf32> to vector<8x128xf32>
    %65 = vector.extract_strided_slice %62 {offsets = [0, 0], sizes = [8, 128], strides = [1, 1]} : vector<8x256xf32> to vector<8x128xf32>
    %66 = vector.extract_strided_slice %62 {offsets = [0, 128], sizes = [8, 128], strides = [1, 1]} : vector<8x256xf32> to vector<8x128xf32>
    %67 = arith.select %9, %65, %66 : vector<8x128xi1>, vector<8x128xf32>
    %68 = arith.addf %64, %67 : vector<8x128xf32>
    %69 = arith.negf %68 : vector<8x128xf32>
    %70 = math.exp %69 : vector<8x128xf32>
    %cst_11 = arith.constant 1.000000e+00 : f32
    %71 = vector.broadcast %cst_11 : f32 to vector<8x128xf32>
    %72 = arith.addf %71, %70 : vector<8x128xf32>
    %73 = arith.divf %71, %72 : vector<8x128xf32>
    %74 = math.tanh %68 : vector<8x128xf32>
    %75 = vector.extract_strided_slice %73 {offsets = [0, 32], sizes = [8, 32], strides = [1, 1]} : vector<8x128xf32> to vector<8x32xf32>
    %76 = arith.mulf %75, %58 : vector<8x32xf32>
    %77 = vector.extract_strided_slice %73 {offsets = [0, 0], sizes = [8, 32], strides = [1, 1]} : vector<8x128xf32> to vector<8x32xf32>
    %78 = vector.extract_strided_slice %74 {offsets = [0, 64], sizes = [8, 32], strides = [1, 1]} : vector<8x128xf32> to vector<8x32xf32>
    %79 = arith.mulf %77, %78 : vector<8x32xf32>
    %80 = arith.addf %76, %79 : vector<8x32xf32>
    %81 = vector.extract_strided_slice %73 {offsets = [0, 96], sizes = [8, 32], strides = [1, 1]} : vector<8x128xf32> to vector<8x32xf32>
    %82 = math.tanh %80 : vector<8x32xf32>
    %83 = arith.mulf %81, %82 : vector<8x32xf32>
    %cst_12 = arith.constant dense<0.000000e+00> : vector<8x256xf32>
    %84 = tpu.matmul %83, %1, %cst_12 {dimension_numbers = #tpu.dot_dimension_numbers<[1], [0], [0], [1], [0, 0, 1, 1], [], []>} : vector<8x32xf32>, vector<32x256xf32>, vector<8x256xf32> -> vector<8x256xf32>
    %85 = vector.extract_strided_slice %15 {offsets = [3, 0, 0], sizes = [1, 8, 128], strides = [1, 1, 1]} : vector<8x8x128xf32> to vector<1x8x128xf32>
    %86 = vector.shape_cast %85 : vector<1x8x128xf32> to vector<8x128xf32>
    %87 = vector.extract_strided_slice %84 {offsets = [0, 0], sizes = [8, 128], strides = [1, 1]} : vector<8x256xf32> to vector<8x128xf32>
    %88 = vector.extract_strided_slice %84 {offsets = [0, 128], sizes = [8, 128], strides = [1, 1]} : vector<8x256xf32> to vector<8x128xf32>
    %89 = arith.select %9, %87, %88 : vector<8x128xi1>, vector<8x128xf32>
    %90 = arith.addf %86, %89 : vector<8x128xf32>
    %91 = arith.negf %90 : vector<8x128xf32>
    %92 = math.exp %91 : vector<8x128xf32>
    %cst_13 = arith.constant 1.000000e+00 : f32
    %93 = vector.broadcast %cst_13 : f32 to vector<8x128xf32>
    %94 = arith.addf %93, %92 : vector<8x128xf32>
    %95 = arith.divf %93, %94 : vector<8x128xf32>
    %96 = math.tanh %90 : vector<8x128xf32>
    %97 = vector.extract_strided_slice %95 {offsets = [0, 32], sizes = [8, 32], strides = [1, 1]} : vector<8x128xf32> to vector<8x32xf32>
    %98 = arith.mulf %97, %80 : vector<8x32xf32>
    %99 = vector.extract_strided_slice %95 {offsets = [0, 0], sizes = [8, 32], strides = [1, 1]} : vector<8x128xf32> to vector<8x32xf32>
    %100 = vector.extract_strided_slice %96 {offsets = [0, 64], sizes = [8, 32], strides = [1, 1]} : vector<8x128xf32> to vector<8x32xf32>
    %101 = arith.mulf %99, %100 : vector<8x32xf32>
    %102 = arith.addf %98, %101 : vector<8x32xf32>
    %103 = vector.extract_strided_slice %95 {offsets = [0, 96], sizes = [8, 32], strides = [1, 1]} : vector<8x128xf32> to vector<8x32xf32>
    %104 = math.tanh %102 : vector<8x32xf32>
    %105 = arith.mulf %103, %104 : vector<8x32xf32>
    %cst_14 = arith.constant dense<0.000000e+00> : vector<8x256xf32>
    %106 = tpu.matmul %105, %1, %cst_14 {dimension_numbers = #tpu.dot_dimension_numbers<[1], [0], [0], [1], [0, 0, 1, 1], [], []>} : vector<8x32xf32>, vector<32x256xf32>, vector<8x256xf32> -> vector<8x256xf32>
    %107 = vector.extract_strided_slice %15 {offsets = [4, 0, 0], sizes = [1, 8, 128], strides = [1, 1, 1]} : vector<8x8x128xf32> to vector<1x8x128xf32>
    %108 = vector.shape_cast %107 : vector<1x8x128xf32> to vector<8x128xf32>
    %109 = vector.extract_strided_slice %106 {offsets = [0, 0], sizes = [8, 128], strides = [1, 1]} : vector<8x256xf32> to vector<8x128xf32>
    %110 = vector.extract_strided_slice %106 {offsets = [0, 128], sizes = [8, 128], strides = [1, 1]} : vector<8x256xf32> to vector<8x128xf32>
    %111 = arith.select %9, %109, %110 : vector<8x128xi1>, vector<8x128xf32>
    %112 = arith.addf %108, %111 : vector<8x128xf32>
    %113 = arith.negf %112 : vector<8x128xf32>
    %114 = math.exp %113 : vector<8x128xf32>
    %cst_15 = arith.constant 1.000000e+00 : f32
    %115 = vector.broadcast %cst_15 : f32 to vector<8x128xf32>
    %116 = arith.addf %115, %114 : vector<8x128xf32>
    %117 = arith.divf %115, %116 : vector<8x128xf32>
    %118 = math.tanh %112 : vector<8x128xf32>
    %119 = vector.extract_strided_slice %117 {offsets = [0, 32], sizes = [8, 32], strides = [1, 1]} : vector<8x128xf32> to vector<8x32xf32>
    %120 = arith.mulf %119, %102 : vector<8x32xf32>
    %121 = vector.extract_strided_slice %117 {offsets = [0, 0], sizes = [8, 32], strides = [1, 1]} : vector<8x128xf32> to vector<8x32xf32>
    %122 = vector.extract_strided_slice %118 {offsets = [0, 64], sizes = [8, 32], strides = [1, 1]} : vector<8x128xf32> to vector<8x32xf32>
    %123 = arith.mulf %121, %122 : vector<8x32xf32>
    %124 = arith.addf %120, %123 : vector<8x32xf32>
    %125 = vector.extract_strided_slice %117 {offsets = [0, 96], sizes = [8, 32], strides = [1, 1]} : vector<8x128xf32> to vector<8x32xf32>
    %126 = math.tanh %124 : vector<8x32xf32>
    %127 = arith.mulf %125, %126 : vector<8x32xf32>
    %cst_16 = arith.constant dense<0.000000e+00> : vector<8x256xf32>
    %128 = tpu.matmul %127, %1, %cst_16 {dimension_numbers = #tpu.dot_dimension_numbers<[1], [0], [0], [1], [0, 0, 1, 1], [], []>} : vector<8x32xf32>, vector<32x256xf32>, vector<8x256xf32> -> vector<8x256xf32>
    %129 = vector.extract_strided_slice %15 {offsets = [5, 0, 0], sizes = [1, 8, 128], strides = [1, 1, 1]} : vector<8x8x128xf32> to vector<1x8x128xf32>
    %130 = vector.shape_cast %129 : vector<1x8x128xf32> to vector<8x128xf32>
    %131 = vector.extract_strided_slice %128 {offsets = [0, 0], sizes = [8, 128], strides = [1, 1]} : vector<8x256xf32> to vector<8x128xf32>
    %132 = vector.extract_strided_slice %128 {offsets = [0, 128], sizes = [8, 128], strides = [1, 1]} : vector<8x256xf32> to vector<8x128xf32>
    %133 = arith.select %9, %131, %132 : vector<8x128xi1>, vector<8x128xf32>
    %134 = arith.addf %130, %133 : vector<8x128xf32>
    %135 = arith.negf %134 : vector<8x128xf32>
    %136 = math.exp %135 : vector<8x128xf32>
    %cst_17 = arith.constant 1.000000e+00 : f32
    %137 = vector.broadcast %cst_17 : f32 to vector<8x128xf32>
    %138 = arith.addf %137, %136 : vector<8x128xf32>
    %139 = arith.divf %137, %138 : vector<8x128xf32>
    %140 = math.tanh %134 : vector<8x128xf32>
    %141 = vector.extract_strided_slice %139 {offsets = [0, 32], sizes = [8, 32], strides = [1, 1]} : vector<8x128xf32> to vector<8x32xf32>
    %142 = arith.mulf %141, %124 : vector<8x32xf32>
    %143 = vector.extract_strided_slice %139 {offsets = [0, 0], sizes = [8, 32], strides = [1, 1]} : vector<8x128xf32> to vector<8x32xf32>
    %144 = vector.extract_strided_slice %140 {offsets = [0, 64], sizes = [8, 32], strides = [1, 1]} : vector<8x128xf32> to vector<8x32xf32>
    %145 = arith.mulf %143, %144 : vector<8x32xf32>
    %146 = arith.addf %142, %145 : vector<8x32xf32>
    %147 = vector.extract_strided_slice %139 {offsets = [0, 96], sizes = [8, 32], strides = [1, 1]} : vector<8x128xf32> to vector<8x32xf32>
    %148 = math.tanh %146 : vector<8x32xf32>
    %149 = arith.mulf %147, %148 : vector<8x32xf32>
    %cst_18 = arith.constant dense<0.000000e+00> : vector<8x256xf32>
    %150 = tpu.matmul %149, %1, %cst_18 {dimension_numbers = #tpu.dot_dimension_numbers<[1], [0], [0], [1], [0, 0, 1, 1], [], []>} : vector<8x32xf32>, vector<32x256xf32>, vector<8x256xf32> -> vector<8x256xf32>
    %151 = vector.extract_strided_slice %15 {offsets = [6, 0, 0], sizes = [1, 8, 128], strides = [1, 1, 1]} : vector<8x8x128xf32> to vector<1x8x128xf32>
    %152 = vector.shape_cast %151 : vector<1x8x128xf32> to vector<8x128xf32>
    %153 = vector.extract_strided_slice %150 {offsets = [0, 0], sizes = [8, 128], strides = [1, 1]} : vector<8x256xf32> to vector<8x128xf32>
    %154 = vector.extract_strided_slice %150 {offsets = [0, 128], sizes = [8, 128], strides = [1, 1]} : vector<8x256xf32> to vector<8x128xf32>
    %155 = arith.select %9, %153, %154 : vector<8x128xi1>, vector<8x128xf32>
    %156 = arith.addf %152, %155 : vector<8x128xf32>
    %157 = arith.negf %156 : vector<8x128xf32>
    %158 = math.exp %157 : vector<8x128xf32>
    %cst_19 = arith.constant 1.000000e+00 : f32
    %159 = vector.broadcast %cst_19 : f32 to vector<8x128xf32>
    %160 = arith.addf %159, %158 : vector<8x128xf32>
    %161 = arith.divf %159, %160 : vector<8x128xf32>
    %162 = math.tanh %156 : vector<8x128xf32>
    %163 = vector.extract_strided_slice %161 {offsets = [0, 32], sizes = [8, 32], strides = [1, 1]} : vector<8x128xf32> to vector<8x32xf32>
    %164 = arith.mulf %163, %146 : vector<8x32xf32>
    %165 = vector.extract_strided_slice %161 {offsets = [0, 0], sizes = [8, 32], strides = [1, 1]} : vector<8x128xf32> to vector<8x32xf32>
    %166 = vector.extract_strided_slice %162 {offsets = [0, 64], sizes = [8, 32], strides = [1, 1]} : vector<8x128xf32> to vector<8x32xf32>
    %167 = arith.mulf %165, %166 : vector<8x32xf32>
    %168 = arith.addf %164, %167 : vector<8x32xf32>
    %169 = vector.extract_strided_slice %161 {offsets = [0, 96], sizes = [8, 32], strides = [1, 1]} : vector<8x128xf32> to vector<8x32xf32>
    %170 = math.tanh %168 : vector<8x32xf32>
    %171 = arith.mulf %169, %170 : vector<8x32xf32>
    %cst_20 = arith.constant dense<0.000000e+00> : vector<8x256xf32>
    %172 = tpu.matmul %171, %1, %cst_20 {dimension_numbers = #tpu.dot_dimension_numbers<[1], [0], [0], [1], [0, 0, 1, 1], [], []>} : vector<8x32xf32>, vector<32x256xf32>, vector<8x256xf32> -> vector<8x256xf32>
    %173 = vector.extract_strided_slice %15 {offsets = [7, 0, 0], sizes = [1, 8, 128], strides = [1, 1, 1]} : vector<8x8x128xf32> to vector<1x8x128xf32>
    %174 = vector.shape_cast %173 : vector<1x8x128xf32> to vector<8x128xf32>
    %175 = vector.extract_strided_slice %172 {offsets = [0, 0], sizes = [8, 128], strides = [1, 1]} : vector<8x256xf32> to vector<8x128xf32>
    %176 = vector.extract_strided_slice %172 {offsets = [0, 128], sizes = [8, 128], strides = [1, 1]} : vector<8x256xf32> to vector<8x128xf32>
    %177 = arith.select %9, %175, %176 : vector<8x128xi1>, vector<8x128xf32>
    %178 = arith.addf %174, %177 : vector<8x128xf32>
    %179 = arith.negf %178 : vector<8x128xf32>
    %180 = math.exp %179 : vector<8x128xf32>
    %cst_21 = arith.constant 1.000000e+00 : f32
    %181 = vector.broadcast %cst_21 : f32 to vector<8x128xf32>
    %182 = arith.addf %181, %180 : vector<8x128xf32>
    %183 = arith.divf %181, %182 : vector<8x128xf32>
    %184 = math.tanh %178 : vector<8x128xf32>
    %185 = vector.extract_strided_slice %183 {offsets = [0, 32], sizes = [8, 32], strides = [1, 1]} : vector<8x128xf32> to vector<8x32xf32>
    %186 = arith.mulf %185, %168 : vector<8x32xf32>
    %187 = vector.extract_strided_slice %183 {offsets = [0, 0], sizes = [8, 32], strides = [1, 1]} : vector<8x128xf32> to vector<8x32xf32>
    %188 = vector.extract_strided_slice %184 {offsets = [0, 64], sizes = [8, 32], strides = [1, 1]} : vector<8x128xf32> to vector<8x32xf32>
    %189 = arith.mulf %187, %188 : vector<8x32xf32>
    %190 = arith.addf %186, %189 : vector<8x32xf32>
    %191 = vector.extract_strided_slice %183 {offsets = [0, 96], sizes = [8, 32], strides = [1, 1]} : vector<8x128xf32> to vector<8x32xf32>
    %192 = math.tanh %190 : vector<8x32xf32>
    %193 = arith.mulf %191, %192 : vector<8x32xf32>
    %194 = vector.extract_strided_slice %193 {offsets = [0, 0], sizes = [2, 32], strides = [1, 1]} : vector<8x32xf32> to vector<2x32xf32>
    %195 = vector.extract_strided_slice %193 {offsets = [4, 0], sizes = [2, 32], strides = [1, 1]} : vector<8x32xf32> to vector<2x32xf32>
    %196 = tpu.concatenate %194, %195 in 1 : vector<2x32xf32>, vector<2x32xf32> -> vector<2x64xf32>
    %197 = vector.extract_strided_slice %193 {offsets = [2, 0], sizes = [2, 32], strides = [1, 1]} : vector<8x32xf32> to vector<2x32xf32>
    %198 = vector.extract_strided_slice %193 {offsets = [6, 0], sizes = [2, 32], strides = [1, 1]} : vector<8x32xf32> to vector<2x32xf32>
    %199 = tpu.concatenate %197, %198 in 1 : vector<2x32xf32>, vector<2x32xf32> -> vector<2x64xf32>
    %200 = arith.mulf %196, %199 : vector<2x64xf32>
    %c0_22 = arith.constant 0 : index
    %c0_23 = arith.constant 0 : index
    %201 = vector.load %arg2[%c0_22, %c0_23] : memref<72x128xf32, #tpu.memory_space<vmem>>, vector<72x128xf32>
    %202 = vector.extract_strided_slice %201 {offsets = [0, 0], sizes = [64, 128], strides = [1, 1]} : vector<72x128xf32> to vector<64x128xf32>
    %cst_24 = arith.constant dense<0.000000e+00> : vector<2x128xf32>
    %203 = tpu.matmul %200, %202, %cst_24 {dimension_numbers = #tpu.dot_dimension_numbers<[1], [0], [0], [1], [0, 0, 1, 1], [], []>} : vector<2x64xf32>, vector<64x128xf32>, vector<2x128xf32> -> vector<2x128xf32>
    %204 = vector.extract_strided_slice %201 {offsets = [64, 0], sizes = [1, 128], strides = [1, 1]} : vector<72x128xf32> to vector<1x128xf32>
    %205 = vector.broadcast %204 : vector<1x128xf32> to vector<2x128xf32>
    %206 = arith.addf %203, %205 : vector<2x128xf32>
    %c0_25 = arith.constant 0 : index
    %c0_26 = arith.constant 0 : index
    %207 = vector.load %arg3[%c0_25, %c0_26] : memref<2x128xf32, #tpu.memory_space<vmem>>, vector<2x128xf32>
    tpu.vector_store %arg3[%c0_25, %c0_26], %206 {strides = array<i32>} : memref<2x128xf32, #tpu.memory_space<vmem>>, vector<2x128xf32>,
    return
  }
}

</mosaic_0001>

<llo_original>
// kernel: tpu_custom_call.1
$region0: #{tpu_custom_call.1}
  #allocation0 [shape = 'u32[]', space=smem, size = 0x4, offset = 0x4, fixed_abs, tag = 'smem constant byte address 0x4 - core index']
  #allocation1 [shape = 'u32[72,128]{1,0:T(1,128)}', space=vmem, size = 0x9000, scoped, tag = 'internal scratch']
  %s0 = inlined_call_operand.hbm [shape: f32[8,8,40], index: 0, kind: input, shape index: {}]
  %s1 = inlined_call_operand.hbm [shape: f32[72,256], index: 1, kind: input, shape index: {}]
  %s2 = inlined_call_operand.hbm [shape: f32[72,128], index: 2, kind: input, shape index: {}]
  %s3 = inlined_call_operand.hbm [shape: f32[2,128], index: 3, kind: output, shape index: {}]
  %s4 = sld [smem:[#allocation0]]
  $region34: #{tpu_custom_call.1} parent=0
    _
  %s6 = ssub.s32 1, %s4
  %s7 = scalar_select 0, %s6, %s4
  $region1: #{tpu_custom_call.1} parent=0
    #allocation2 [shape = 'u8[32768]{0}', space=vmem, size = 0x8000, scoped, tag = 'input window, operand 0, single buffered']
    #allocation3 [shape = 's32[1]{0}', space=sflag, size = 0x4, scoped, tag = 'scoped memory for tpu_custom_call.1']
    #allocation4 [shape = 's32[1]{0}', space=sflag, size = 0x4, scoped, tag = 'scoped memory for tpu_custom_call.1']
    #allocation5 [shape = 'u8[73728]{0}', space=vmem, size = 0x12000, scoped, tag = 'input window, operand 1, single buffered']
    #allocation6 [shape = 's32[1]{0}', space=sflag, size = 0x4, scoped, tag = 'scoped memory for tpu_custom_call.1']
    #allocation7 [shape = 'u8[36864]{0}', space=vmem, size = 0x9000, scoped, tag = 'input window, operand 2, single buffered']
    #allocation8 [shape = 'u8[1024]{0}', space=vmem, size = 0x400, scoped, tag = 'output window, operand 0, single buffered']
    %8 = vsyncpa [#allocation3], 0
    %9 = vsyncpa [#allocation6], 0
    %10 = vsyncpa [#allocation4], 0
    // Predicated region
    $region2: #{tpu_custom_call.1} parent=1 // pred_check
      _
    $region3: #{tpu_custom_call.1} parent=1 // pred_check_branch
      %12 = sbr.rel (0) target = $region5
    $region4: #{tpu_custom_call.1} parent=1 // pred_region
      %14 = vsyncadd [#allocation3], 0
      %s15 = sshll.u32 %s0, 4
      %s16 = int_to_ptr.hbm [resolvable:$true] %s15
      %s17 = sshll.u32 [#allocation2], 4
      %s18 = int_to_ptr.vmem [resolvable:$true] %s17
      %23 = dma.hbm_to_vmem [thread:$0]  %s16, 1024, %s18, [#allocation3], 128, 128, 8
    $region5: #{tpu_custom_call.1} parent=1 // pred_fallthru
      _
    // Predicated region
    $region6: #{tpu_custom_call.1} parent=1 // pred_check
      _
    $region7: #{tpu_custom_call.1} parent=1 // pred_check_branch
      %25 = sbr.rel (0) target = $region9
    $region8: #{tpu_custom_call.1} parent=1 // pred_region
      %27 = vsyncadd [#allocation6], 0
      %s28 = sshll.u32 %s1, 4
      %s29 = int_to_ptr.hbm [resolvable:$true] %s28
      %s30 = sshll.u32 [#allocation5], 4
      %s31 = int_to_ptr.vmem [resolvable:$true] %s30
      %36 = dma.hbm_to_vmem [thread:$0]  %s29, 2304, %s31, [#allocation6], 256, 256, 16
    $region9: #{tpu_custom_call.1} parent=1 // pred_fallthru
      _
    // Predicated region
    $region10: #{tpu_custom_call.1} parent=1 // pred_check
      _
    $region11: #{tpu_custom_call.1} parent=1 // pred_check_branch
      %38 = sbr.rel (0) target = $region13
    $region12: #{tpu_custom_call.1} parent=1 // pred_region
      %40 = vsyncadd [#allocation6], 0
      %s41 = sshll.u32 %s2, 4
      %s42 = int_to_ptr.hbm [resolvable:$true] %s41
      %s43 = sshll.u32 [#allocation7], 4
      %s44 = int_to_ptr.vmem [resolvable:$true] %s43
      %49 = dma.hbm_to_vmem [thread:$0]  %s42, 1152, %s44, [#allocation6], 128, 128, 8
    $region13: #{tpu_custom_call.1} parent=1 // pred_fallthru
      _
    // Predicated region
    $region14: #{tpu_custom_call.1} parent=1 // pred_check
      _
    $region15: #{tpu_custom_call.1} parent=1 // pred_check_branch
      %51 = sbr.rel (0) target = $region17
    $region16: #{tpu_custom_call.1} parent=1 // pred_region
      %53 = dma.done [#allocation3], 1024
    $region17: #{tpu_custom_call.1} parent=1 // pred_fallthru
      _
    // Predicated region
    $region18: #{tpu_custom_call.1} parent=1 // pred_check
      _
    $region19: #{tpu_custom_call.1} parent=1 // pred_check_branch
      %55 = sbr.rel (0) target = $region21
    $region20: #{tpu_custom_call.1} parent=1 // pred_region
      %57 = dma.done [#allocation6], 2304
    $region21: #{tpu_custom_call.1} parent=1 // pred_fallthru
      _
    // Predicated region
    $region22: #{tpu_custom_call.1} parent=1 // pred_check
      _
    $region23: #{tpu_custom_call.1} parent=1 // pred_check_branch
      %59 = sbr.rel (0) target = $region25
    $region24: #{tpu_custom_call.1} parent=1 // pred_region
      %61 = dma.done [#allocation6], 1152
    $region25: #{tpu_custom_call.1} parent=1 // pred_fallthru
      _
    %v62 = vld [vmem:[#allocation5] sm:$0xff]
    %v63 = vld [vmem:[#allocation5 + $0x8] sm:$0xff]
    %v64 = vld [vmem:[#allocation5 + $0x10] sm:$0xff]
    %v65 = vld [vmem:[#allocation5 + $0x18] sm:$0xff]
    %v66 = vld [vmem:[#allocation5 + $0x20] sm:$0xff]
    %v67 = vld [vmem:[#allocation5 + $0x28] sm:$0xff]
    %v68 = vld [vmem:[#allocation5 + $0x30] sm:$0xff]
    %v69 = vld [vmem:[#allocation5 + $0x38] sm:$0xff]
    %v70 = vld [vmem:[#allocation5 + $0x40] sm:$0xff]
    %v71 = vld [vmem:[#allocation5 + $0x48] sm:$0xff]
    %v72 = vld [vmem:[#allocation5 + $0x50] sm:$0xff]
    %v73 = vld [vmem:[#allocation5 + $0x58] sm:$0xff]
    %v74 = vld [vmem:[#allocation5 + $0x60] sm:$0xff]
    %v75 = vld [vmem:[#allocation5 + $0x68] sm:$0xff]
    %v76 = vld [vmem:[#allocation5 + $0x70] sm:$0xff]
    %v77 = vld [vmem:[#allocation5 + $0x78] sm:$0xff]
    %v78 = vld [vmem:[#allocation5 + $0x80] sm:$0xff]
    %v79 = vld [vmem:[#allocation5 + $0x88] sm:$0xff]
    %v80 = vld [vmem:[#allocation2] sm:$0xff]
    %v81 = vld [vmem:[#allocation2 + $0x8] sm:$0xff]
    %v82 = vld [vmem:[#allocation2 + $0x10] sm:$0xff]
    %v83 = vld [vmem:[#allocation2 + $0x18] sm:$0xff]
    %v84 = vld [vmem:[#allocation2 + $0x20] sm:$0xff]
    %v85 = vld [vmem:[#allocation2 + $0x28] sm:$0xff]
    %v86 = vld [vmem:[#allocation2 + $0x30] sm:$0xff]
    %v87 = vld [vmem:[#allocation2 + $0x38] sm:$0xff]
    %vm88 = vcmask 326656
    %v90 = vsel %vm88, %v80, 0
    %v93 = vsel %vm88, %v81, 0
    %v96 = vsel %vm88, %v82, 0
    %v99 = vsel %vm88, %v83, 0
    %v102 = vsel %vm88, %v84, 0
    %v105 = vsel %vm88, %v85, 0
    %v108 = vsel %vm88, %v86, 0
    %v111 = vsel %vm88, %v87, 0
    %113 = vmatpush.msra.mxu0 0.0
    %114 = vmatpush.msra.mxu0 0.0
    %115 = vmatpush.msra.mxu0 0.0
    %116 = vmatpush.msra.mxu0 0.0
    %117 = vmatpush.msra.mxu0 0.0
    %118 = vmatpush.msra.mxu0 0.0
    %119 = vmatpush.msra.mxu0 0.0
    %120 = vmatpush.msra.mxu0 0.0
    %121 = vmatpush.msra.mxu0 0.0
    %122 = vmatpush.msra.mxu0 0.0
    %123 = vmatpush.msra.mxu0 0.0
    %124 = vmatpush.msra.mxu0 %v78
    %125 = vmatpush.msra.mxu0 %v76
    %126 = vmatpush.msra.mxu0 %v74
    %127 = vmatpush.msra.mxu0 %v72
    %128 = vmatpush.msra.mxu0 %v70
    %129 = vmatmul.f32.gmra.mxu0 %v90
    %v130 = vpop.f32.mrf.mxu0
    %v131 = vadd.f32 0.0, %v130
    %132 = vmatmul.f32.gmra.mxu0 %v93
    %v133 = vpop.f32.mrf.mxu0
    %v134 = vadd.f32 0.0, %v133
    %135 = vmatmul.f32.gmra.mxu0 %v96
    %v136 = vpop.f32.mrf.mxu0
    %v137 = vadd.f32 0.0, %v136
    %138 = vmatmul.f32.gmra.mxu0 %v99
    %v139 = vpop.f32.mrf.mxu0
    %v140 = vadd.f32 0.0, %v139
    %141 = vmatmul.f32.gmra.mxu0 %v102
    %v142 = vpop.f32.mrf.mxu0
    %v143 = vadd.f32 0.0, %v142
    %144 = vmatmul.f32.gmra.mxu0 %v105
    %v145 = vpop.f32.mrf.mxu0
    %v146 = vadd.f32 0.0, %v145
    %147 = vmatmul.f32.gmra.mxu0 %v108
    %v148 = vpop.f32.mrf.mxu0
    %v149 = vadd.f32 0.0, %v148
    %150 = vmatmul.f32.gmra.mxu0 %v111
    %v151 = vpop.f32.mrf.mxu0
    %v152 = vadd.f32 0.0, %v151
    %153 = vdwg.mxu0
    %154 = vmatpush.msra.mxu0 0.0
    %155 = vmatpush.msra.mxu0 0.0
    %156 = vmatpush.msra.mxu0 0.0
    %157 = vmatpush.msra.mxu0 0.0
    %158 = vmatpush.msra.mxu0 0.0
    %159 = vmatpush.msra.mxu0 0.0
    %160 = vmatpush.msra.mxu0 0.0
    %161 = vmatpush.msra.mxu0 0.0
    %162 = vmatpush.msra.mxu0 0.0
    %163 = vmatpush.msra.mxu0 0.0
    %164 = vmatpush.msra.mxu0 0.0
    %165 = vmatpush.msra.mxu0 %v79
    %166 = vmatpush.msra.mxu0 %v77
    %167 = vmatpush.msra.mxu0 %v75
    %168 = vmatpush.msra.mxu0 %v73
    %169 = vmatpush.msra.mxu0 %v71
    %170 = vmatmul.f32.gmra.mxu0 %v90
    %v171 = vpop.f32.mrf.mxu0
    %v172 = vadd.f32 0.0, %v171
    %173 = vmatmul.f32.gmra.mxu0 %v93
    %v174 = vpop.f32.mrf.mxu0
    %v175 = vadd.f32 0.0, %v174
    %176 = vmatmul.f32.gmra.mxu0 %v96
    %v177 = vpop.f32.mrf.mxu0
    %v178 = vadd.f32 0.0, %v177
    %179 = vmatmul.f32.gmra.mxu0 %v99
    %v180 = vpop.f32.mrf.mxu0
    %v181 = vadd.f32 0.0, %v180
    %182 = vmatmul.f32.gmra.mxu0 %v102
    %v183 = vpop.f32.mrf.mxu0
    %v184 = vadd.f32 0.0, %v183
    %185 = vmatmul.f32.gmra.mxu0 %v105
    %v186 = vpop.f32.mrf.mxu0
    %v187 = vadd.f32 0.0, %v186
    %188 = vmatmul.f32.gmra.mxu0 %v108
    %v189 = vpop.f32.mrf.mxu0
    %v190 = vadd.f32 0.0, %v189
    %191 = vmatmul.f32.gmra.mxu0 %v111
    %v192 = vpop.f32.mrf.mxu0
    %v193 = vadd.f32 0.0, %v192
    %194 = vdwg.mxu0
    %v195 = vlaneseq
    %v196 = vshrl.u32 %v195, 7
    %vm197 = vcmp.lt.s32.totalorder %v196, 4
    %v198 = vsel %vm197, 1, 0
    %vm199 = vcmp.eq.s32.totalorder %v198, 1
    %v200 = vsel %vm199, %v131, %v172
    %v201 = vsel %vm199, %v134, %v175
    %v202 = vsel %vm199, %v137, %v178
    %v203 = vsel %vm199, %v140, %v181
    %v204 = vsel %vm199, %v143, %v184
    %v205 = vsel %vm199, %v146, %v187
    %v206 = vsel %vm199, %v149, %v190
    %v207 = vsel %vm199, %v152, %v193
    %vm208 = vcmask 261120
    %v210 = vsel %vm208, 0.0, 0
    %212 = vmatpush.msra.mxu0 0.0
    %213 = vmatpush.msra.mxu0 0.0
    %214 = vmatpush.msra.mxu0 0.0
    %215 = vmatpush.msra.mxu0 0.0
    %216 = vmatpush.msra.mxu0 0.0
    %217 = vmatpush.msra.mxu0 0.0
    %218 = vmatpush.msra.mxu0 0.0
    %219 = vmatpush.msra.mxu0 0.0
    %220 = vmatpush.msra.mxu0 0.0
    %221 = vmatpush.msra.mxu0 0.0
    %222 = vmatpush.msra.mxu0 0.0
    %223 = vmatpush.msra.mxu0 0.0
    %224 = vmatpush.msra.mxu0 %v68
    %225 = vmatpush.msra.mxu0 %v66
    %226 = vmatpush.msra.mxu0 %v64
    %227 = vmatpush.msra.mxu0 %v62
    %228 = vmatmul.f32.gmra.mxu0 %v210
    %v229 = vpop.f32.mrf.mxu0
    %v230 = vadd.f32 0.0, %v229
    %231 = vdwg.mxu0
    %232 = vmatpush.msra.mxu0 0.0
    %233 = vmatpush.msra.mxu0 0.0
    %234 = vmatpush.msra.mxu0 0.0
    %235 = vmatpush.msra.mxu0 0.0
    %236 = vmatpush.msra.mxu0 0.0
    %237 = vmatpush.msra.mxu0 0.0
    %238 = vmatpush.msra.mxu0 0.0
    %239 = vmatpush.msra.mxu0 0.0
    %240 = vmatpush.msra.mxu0 0.0
    %241 = vmatpush.msra.mxu0 0.0
    %242 = vmatpush.msra.mxu0 0.0
    %243 = vmatpush.msra.mxu0 0.0
    %244 = vmatpush.msra.mxu0 %v69
    %245 = vmatpush.msra.mxu0 %v67
    %246 = vmatpush.msra.mxu0 %v65
    %247 = vmatpush.msra.mxu0 %v63
    %248 = vmatmul.f32.gmra.mxu0 %v210
    %v249 = vpop.f32.mrf.mxu0
    %v250 = vadd.f32 0.0, %v249
    %251 = vdwg.mxu0
    %v252 = vsel %vm197, %v230, %v250
    %v253 = vadd.f32 %v200, %v252
    %v254 = vxor.u32 %v253, 2147483648
    %v255 = vmul.f32 %v254, 1.442695
    %v256 = vpow.pop %v255
    %v257 = vadd.f32 %v256, 1.0
    %v258 = vrcp.pop %v257
    %v259 = vmul.f32 %v257, %v258
    %v260 = vsub.f32 1.0, %v259
    %v261 = vmul.f32 %v258, %v260
    %v262 = vadd.f32 %v258, %v261
    %vm263 = vweird.f32 %v257
    %vm264 = vweird.f32 %v258
    %vm265 = vmor %vm263, %vm264
    %v266 = vsel %vm265, %v258, %v262
    %v267 = vand.u32 2147483647, %v257
    %vm268 = vcmp.eq.f32.partialorder %v267, 8.507059e+37
    %v269 = vand.u32 %v257, 2147483648
    %v270 = vor.u32 1.1754944e-38, %v269
    %v271 = vsel %vm268, %v270, %v266
    %v272 = vmul.f32 1.0, %v271
    %v273 = vtanh.pop %v253
    %v274 = vmul.f32 %v272, 0.0
    %276 = vrot.lane.b32.xlu0 %v273, 64
    %v277 = vpop.permute.xlu0 %276
    %v279 = vmul.f32 %v272, %v277
    %281 = vrot.lane.b32.xlu0 %v279, 32
    %v282 = vpop.permute.xlu0 %281
    %v284 = vadd.f32 %v274, %v282
    %v285 = vtanh.pop %v284
    %287 = vrot.lane.b32.xlu0 %v285, 64
    %v288 = vpop.permute.xlu0 %287
    %v290 = vmul.f32 %v272, %v288
    %292 = vrot.lane.b32.xlu0 %v290, 32
    %v293 = vpop.permute.xlu0 %292
    %v294 = vsel %vm208, %v293, 0
    %296 = vmatpush.msra.mxu0 0.0
    %297 = vmatpush.msra.mxu0 0.0
    %298 = vmatpush.msra.mxu0 0.0
    %299 = vmatpush.msra.mxu0 0.0
    %300 = vmatpush.msra.mxu0 0.0
    %301 = vmatpush.msra.mxu0 0.0
    %302 = vmatpush.msra.mxu0 0.0
    %303 = vmatpush.msra.mxu0 0.0
    %304 = vmatpush.msra.mxu0 0.0
    %305 = vmatpush.msra.mxu0 0.0
    %306 = vmatpush.msra.mxu0 0.0
    %307 = vmatpush.msra.mxu0 0.0
    %308 = vmatpush.msra.mxu0 %v68
    %309 = vmatpush.msra.mxu0 %v66
    %310 = vmatpush.msra.mxu0 %v64
    %311 = vmatpush.msra.mxu0 %v62
    %312 = vmatmul.f32.gmra.mxu0 %v294
    %v313 = vpop.f32.mrf.mxu0
    %v314 = vadd.f32 0.0, %v313
    %315 = vdwg.mxu0
    %316 = vmatpush.msra.mxu0 0.0
    %317 = vmatpush.msra.mxu0 0.0
    %318 = vmatpush.msra.mxu0 0.0
    %319 = vmatpush.msra.mxu0 0.0
    %320 = vmatpush.msra.mxu0 0.0
    %321 = vmatpush.msra.mxu0 0.0
    %322 = vmatpush.msra.mxu0 0.0
    %323 = vmatpush.msra.mxu0 0.0
    %324 = vmatpush.msra.mxu0 0.0
    %325 = vmatpush.msra.mxu0 0.0
    %326 = vmatpush.msra.mxu0 0.0
    %327 = vmatpush.msra.mxu0 0.0
    %328 = vmatpush.msra.mxu0 %v69
    %329 = vmatpush.msra.mxu0 %v67
    %330 = vmatpush.msra.mxu0 %v65
    %331 = vmatpush.msra.mxu0 %v63
    %332 = vmatmul.f32.gmra.mxu0 %v294
    %v333 = vpop.f32.mrf.mxu0
    %v334 = vadd.f32 0.0, %v333
    %335 = vdwg.mxu0
    %v336 = vsel %vm197, %v314, %v334
    %v337 = vadd.f32 %v201, %v336
    %v338 = vxor.u32 %v337, 2147483648
    %v339 = vmul.f32 %v338, 1.442695
    %v340 = vpow.pop %v339
    %v341 = vadd.f32 %v340, 1.0
    %v342 = vrcp.pop %v341
    %v343 = vmul.f32 %v341, %v342
    %v344 = vsub.f32 1.0, %v343
    %v345 = vmul.f32 %v342, %v344
    %v346 = vadd.f32 %v342, %v345
    %vm347 = vweird.f32 %v341
    %vm348 = vweird.f32 %v342
    %vm349 = vmor %vm347, %vm348
    %v350 = vsel %vm349, %v342, %v346
    %v351 = vand.u32 2147483647, %v341
    %vm352 = vcmp.eq.f32.partialorder %v351, 8.507059e+37
    %v353 = vand.u32 %v341, 2147483648
    %v354 = vor.u32 1.1754944e-38, %v353
    %v355 = vsel %vm352, %v354, %v350
    %v356 = vmul.f32 1.0, %v355
    %v357 = vtanh.pop %v337
    %v358 = vmul.f32 %v356, %v284
    %360 = vrot.lane.b32.xlu0 %v357, 64
    %v361 = vpop.permute.xlu0 %360
    %v363 = vmul.f32 %v356, %v361
    %365 = vrot.lane.b32.xlu0 %v363, 32
    %v366 = vpop.permute.xlu0 %365
    %v368 = vadd.f32 %v358, %v366
    %v369 = vtanh.pop %v368
    %371 = vrot.lane.b32.xlu0 %v369, 64
    %v372 = vpop.permute.xlu0 %371
    %v374 = vmul.f32 %v356, %v372
    %376 = vrot.lane.b32.xlu0 %v374, 32
    %v377 = vpop.permute.xlu0 %376
    %v378 = vsel %vm208, %v377, 0
    %380 = vmatpush.msra.mxu0 0.0
    %381 = vmatpush.msra.mxu0 0.0
    %382 = vmatpush.msra.mxu0 0.0
    %383 = vmatpush.msra.mxu0 0.0
    %384 = vmatpush.msra.mxu0 0.0
    %385 = vmatpush.msra.mxu0 0.0
    %386 = vmatpush.msra.mxu0 0.0
    %387 = vmatpush.msra.mxu0 0.0
    %388 = vmatpush.msra.mxu0 0.0
    %389 = vmatpush.msra.mxu0 0.0
    %390 = vmatpush.msra.mxu0 0.0
    %391 = vmatpush.msra.mxu0 0.0
    %392 = vmatpush.msra.mxu0 %v68
    %393 = vmatpush.msra.mxu0 %v66
    %394 = vmatpush.msra.mxu0 %v64
    %395 = vmatpush.msra.mxu0 %v62
    %396 = vmatmul.f32.gmra.mxu0 %v378
    %v397 = vpop.f32.mrf.mxu0
    %v398 = vadd.f32 0.0, %v397
    %399 = vdwg.mxu0
    %400 = vmatpush.msra.mxu0 0.0
    %401 = vmatpush.msra.mxu0 0.0
    %402 = vmatpush.msra.mxu0 0.0
    %403 = vmatpush.msra.mxu0 0.0
    %404 = vmatpush.msra.mxu0 0.0
    %405 = vmatpush.msra.mxu0 0.0
    %406 = vmatpush.msra.mxu0 0.0
    %407 = vmatpush.msra.mxu0 0.0
    %408 = vmatpush.msra.mxu0 0.0
    %409 = vmatpush.msra.mxu0 0.0
    %410 = vmatpush.msra.mxu0 0.0
    %411 = vmatpush.msra.mxu0 0.0
    %412 = vmatpush.msra.mxu0 %v69
    %413 = vmatpush.msra.mxu0 %v67
    %414 = vmatpush.msra.mxu0 %v65
    %415 = vmatpush.msra.mxu0 %v63
    %416 = vmatmul.f32.gmra.mxu0 %v378
    %v417 = vpop.f32.mrf.mxu0
    %v418 = vadd.f32 0.0, %v417
    %419 = vdwg.mxu0
    %v420 = vsel %vm197, %v398, %v418
    %v421 = vadd.f32 %v202, %v420
    %v422 = vxor.u32 %v421, 2147483648
    %v423 = vmul.f32 %v422, 1.442695
    %v424 = vpow.pop %v423
    %v425 = vadd.f32 %v424, 1.0
    %v426 = vrcp.pop %v425
    %v427 = vmul.f32 %v425, %v426
    %v428 = vsub.f32 1.0, %v427
    %v429 = vmul.f32 %v426, %v428
    %v430 = vadd.f32 %v426, %v429
    %vm431 = vweird.f32 %v425
    %vm432 = vweird.f32 %v426
    %vm433 = vmor %vm431, %vm432
    %v434 = vsel %vm433, %v426, %v430
    %v435 = vand.u32 2147483647, %v425
    %vm436 = vcmp.eq.f32.partialorder %v435, 8.507059e+37
    %v437 = vand.u32 %v425, 2147483648
    %v438 = vor.u32 1.1754944e-38, %v437
    %v439 = vsel %vm436, %v438, %v434
    %v440 = vmul.f32 1.0, %v439
    %v441 = vtanh.pop %v421
    %v442 = vmul.f32 %v440, %v368
    %444 = vrot.lane.b32.xlu0 %v441, 64
    %v445 = vpop.permute.xlu0 %444
    %v447 = vmul.f32 %v440, %v445
    %449 = vrot.lane.b32.xlu0 %v447, 32
    %v450 = vpop.permute.xlu0 %449
    %v452 = vadd.f32 %v442, %v450
    %v453 = vtanh.pop %v452
    %455 = vrot.lane.b32.xlu0 %v453, 64
    %v456 = vpop.permute.xlu0 %455
    %v458 = vmul.f32 %v440, %v456
    %460 = vrot.lane.b32.xlu0 %v458, 32
    %v461 = vpop.permute.xlu0 %460
    %v462 = vsel %vm208, %v461, 0
    %464 = vmatpush.msra.mxu0 0.0
    %465 = vmatpush.msra.mxu0 0.0
    %466 = vmatpush.msra.mxu0 0.0
    %467 = vmatpush.msra.mxu0 0.0
    %468 = vmatpush.msra.mxu0 0.0
    %469 = vmatpush.msra.mxu0 0.0
    %470 = vmatpush.msra.mxu0 0.0
    %471 = vmatpush.msra.mxu0 0.0
    %472 = vmatpush.msra.mxu0 0.0
    %473 = vmatpush.msra.mxu0 0.0
    %474 = vmatpush.msra.mxu0 0.0
    %475 = vmatpush.msra.mxu0 0.0
    %476 = vmatpush.msra.mxu0 %v68
    %477 = vmatpush.msra.mxu0 %v66
    %478 = vmatpush.msra.mxu0 %v64
    %479 = vmatpush.msra.mxu0 %v62
    %480 = vmatmul.f32.gmra.mxu0 %v462
    %v481 = vpop.f32.mrf.mxu0
    %v482 = vadd.f32 0.0, %v481
    %483 = vdwg.mxu0
    %484 = vmatpush.msra.mxu0 0.0
    %485 = vmatpush.msra.mxu0 0.0
    %486 = vmatpush.msra.mxu0 0.0
    %487 = vmatpush.msra.mxu0 0.0
    %488 = vmatpush.msra.mxu0 0.0
    %489 = vmatpush.msra.mxu0 0.0
    %490 = vmatpush.msra.mxu0 0.0
    %491 = vmatpush.msra.mxu0 0.0
    %492 = vmatpush.msra.mxu0 0.0
    %493 = vmatpush.msra.mxu0 0.0
    %494 = vmatpush.msra.mxu0 0.0
    %495 = vmatpush.msra.mxu0 0.0
    %496 = vmatpush.msra.mxu0 %v69
    %497 = vmatpush.msra.mxu0 %v67
    %498 = vmatpush.msra.mxu0 %v65
    %499 = vmatpush.msra.mxu0 %v63
    %500 = vmatmul.f32.gmra.mxu0 %v462
    %v501 = vpop.f32.mrf.mxu0
    %v502 = vadd.f32 0.0, %v501
    %503 = vdwg.mxu0
    %v504 = vsel %vm197, %v482, %v502
    %v505 = vadd.f32 %v203, %v504
    %v506 = vxor.u32 %v505, 2147483648
    %v507 = vmul.f32 %v506, 1.442695
    %v508 = vpow.pop %v507
    %v509 = vadd.f32 %v508, 1.0
    %v510 = vrcp.pop %v509
    %v511 = vmul.f32 %v509, %v510
    %v512 = vsub.f32 1.0, %v511
    %v513 = vmul.f32 %v510, %v512
    %v514 = vadd.f32 %v510, %v513
    %vm515 = vweird.f32 %v509
    %vm516 = vweird.f32 %v510
    %vm517 = vmor %vm515, %vm516
    %v518 = vsel %vm517, %v510, %v514
    %v519 = vand.u32 2147483647, %v509
    %vm520 = vcmp.eq.f32.partialorder %v519, 8.507059e+37
    %v521 = vand.u32 %v509, 2147483648
    %v522 = vor.u32 1.1754944e-38, %v521
    %v523 = vsel %vm520, %v522, %v518
    %v524 = vmul.f32 1.0, %v523
    %v525 = vtanh.pop %v505
    %v526 = vmul.f32 %v524, %v452
    %528 = vrot.lane.b32.xlu0 %v525, 64
    %v529 = vpop.permute.xlu0 %528
    %v531 = vmul.f32 %v524, %v529
    %533 = vrot.lane.b32.xlu0 %v531, 32
    %v534 = vpop.permute.xlu0 %533
    %v536 = vadd.f32 %v526, %v534
    %v537 = vtanh.pop %v536
    %539 = vrot.lane.b32.xlu0 %v537, 64
    %v540 = vpop.permute.xlu0 %539
    %v542 = vmul.f32 %v524, %v540
    %544 = vrot.lane.b32.xlu0 %v542, 32
    %v545 = vpop.permute.xlu0 %544
    %v546 = vsel %vm208, %v545, 0
    %548 = vmatpush.msra.mxu0 0.0
    %549 = vmatpush.msra.mxu0 0.0
    %550 = vmatpush.msra.mxu0 0.0
    %551 = vmatpush.msra.mxu0 0.0
    %552 = vmatpush.msra.mxu0 0.0
    %553 = vmatpush.msra.mxu0 0.0
    %554 = vmatpush.msra.mxu0 0.0
    %555 = vmatpush.msra.mxu0 0.0
    %556 = vmatpush.msra.mxu0 0.0
    %557 = vmatpush.msra.mxu0 0.0
    %558 = vmatpush.msra.mxu0 0.0
    %559 = vmatpush.msra.mxu0 0.0
    %560 = vmatpush.msra.mxu0 %v68
    %561 = vmatpush.msra.mxu0 %v66
    %562 = vmatpush.msra.mxu0 %v64
    %563 = vmatpush.msra.mxu0 %v62
    %564 = vmatmul.f32.gmra.mxu0 %v546
    %v565 = vpop.f32.mrf.mxu0
    %v566 = vadd.f32 0.0, %v565
    %567 = vdwg.mxu0
    %568 = vmatpush.msra.mxu0 0.0
    %569 = vmatpush.msra.mxu0 0.0
    %570 = vmatpush.msra.mxu0 0.0
    %571 = vmatpush.msra.mxu0 0.0
    %572 = vmatpush.msra.mxu0 0.0
    %573 = vmatpush.msra.mxu0 0.0
    %574 = vmatpush.msra.mxu0 0.0
    %575 = vmatpush.msra.mxu0 0.0
    %576 = vmatpush.msra.mxu0 0.0
    %577 = vmatpush.msra.mxu0 0.0
    %578 = vmatpush.msra.mxu0 0.0
    %579 = vmatpush.msra.mxu0 0.0
    %580 = vmatpush.msra.mxu0 %v69
    %581 = vmatpush.msra.mxu0 %v67
    %582 = vmatpush.msra.mxu0 %v65
    %583 = vmatpush.msra.mxu0 %v63
    %584 = vmatmul.f32.gmra.mxu0 %v546
    %v585 = vpop.f32.mrf.mxu0
    %v586 = vadd.f32 0.0, %v585
    %587 = vdwg.mxu0
    %v588 = vsel %vm197, %v566, %v586
    %v589 = vadd.f32 %v204, %v588
    %v590 = vxor.u32 %v589, 2147483648
    %v591 = vmul.f32 %v590, 1.442695
    %v592 = vpow.pop %v591
    %v593 = vadd.f32 %v592, 1.0
    %v594 = vrcp.pop %v593
    %v595 = vmul.f32 %v593, %v594
    %v596 = vsub.f32 1.0, %v595
    %v597 = vmul.f32 %v594, %v596
    %v598 = vadd.f32 %v594, %v597
    %vm599 = vweird.f32 %v593
    %vm600 = vweird.f32 %v594
    %vm601 = vmor %vm599, %vm600
    %v602 = vsel %vm601, %v594, %v598
    %v603 = vand.u32 2147483647, %v593
    %vm604 = vcmp.eq.f32.partialorder %v603, 8.507059e+37
    %v605 = vand.u32 %v593, 2147483648
    %v606 = vor.u32 1.1754944e-38, %v605
    %v607 = vsel %vm604, %v606, %v602
    %v608 = vmul.f32 1.0, %v607
    %v609 = vtanh.pop %v589
    %v610 = vmul.f32 %v608, %v536
    %612 = vrot.lane.b32.xlu0 %v609, 64
    %v613 = vpop.permute.xlu0 %612
    %v615 = vmul.f32 %v608, %v613
    %617 = vrot.lane.b32.xlu0 %v615, 32
    %v618 = vpop.permute.xlu0 %617
    %v620 = vadd.f32 %v610, %v618
    %v621 = vtanh.pop %v620
    %623 = vrot.lane.b32.xlu0 %v621, 64
    %v624 = vpop.permute.xlu0 %623
    %v626 = vmul.f32 %v608, %v624
    %628 = vrot.lane.b32.xlu0 %v626, 32
    %v629 = vpop.permute.xlu0 %628
    %v630 = vsel %vm208, %v629, 0
    %632 = vmatpush.msra.mxu0 0.0
    %633 = vmatpush.msra.mxu0 0.0
    %634 = vmatpush.msra.mxu0 0.0
    %635 = vmatpush.msra.mxu0 0.0
    %636 = vmatpush.msra.mxu0 0.0
    %637 = vmatpush.msra.mxu0 0.0
    %638 = vmatpush.msra.mxu0 0.0
    %639 = vmatpush.msra.mxu0 0.0
    %640 = vmatpush.msra.mxu0 0.0
    %641 = vmatpush.msra.mxu0 0.0
    %642 = vmatpush.msra.mxu0 0.0
    %643 = vmatpush.msra.mxu0 0.0
    %644 = vmatpush.msra.mxu0 %v68
    %645 = vmatpush.msra.mxu0 %v66
    %646 = vmatpush.msra.mxu0 %v64
    %647 = vmatpush.msra.mxu0 %v62
    %648 = vmatmul.f32.gmra.mxu0 %v630
    %v649 = vpop.f32.mrf.mxu0
    %v650 = vadd.f32 0.0, %v649
    %651 = vdwg.mxu0
    %652 = vmatpush.msra.mxu0 0.0
    %653 = vmatpush.msra.mxu0 0.0
    %654 = vmatpush.msra.mxu0 0.0
    %655 = vmatpush.msra.mxu0 0.0
    %656 = vmatpush.msra.mxu0 0.0
    %657 = vmatpush.msra.mxu0 0.0
    %658 = vmatpush.msra.mxu0 0.0
    %659 = vmatpush.msra.mxu0 0.0
    %660 = vmatpush.msra.mxu0 0.0
    %661 = vmatpush.msra.mxu0 0.0
    %662 = vmatpush.msra.mxu0 0.0
    %663 = vmatpush.msra.mxu0 0.0
    %664 = vmatpush.msra.mxu0 %v69
    %665 = vmatpush.msra.mxu0 %v67
    %666 = vmatpush.msra.mxu0 %v65
    %667 = vmatpush.msra.mxu0 %v63
    %668 = vmatmul.f32.gmra.mxu0 %v630
    %v669 = vpop.f32.mrf.mxu0
    %v670 = vadd.f32 0.0, %v669
    %671 = vdwg.mxu0
    %v672 = vsel %vm197, %v650, %v670
    %v673 = vadd.f32 %v205, %v672
    %v674 = vxor.u32 %v673, 2147483648
    %v675 = vmul.f32 %v674, 1.442695
    %v676 = vpow.pop %v675
    %v677 = vadd.f32 %v676, 1.0
    %v678 = vrcp.pop %v677
    %v679 = vmul.f32 %v677, %v678
    %v680 = vsub.f32 1.0, %v679
    %v681 = vmul.f32 %v678, %v680
    %v682 = vadd.f32 %v678, %v681
    %vm683 = vweird.f32 %v677
    %vm684 = vweird.f32 %v678
    %vm685 = vmor %vm683, %vm684
    %v686 = vsel %vm685, %v678, %v682
    %v687 = vand.u32 2147483647, %v677
    %vm688 = vcmp.eq.f32.partialorder %v687, 8.507059e+37
    %v689 = vand.u32 %v677, 2147483648
    %v690 = vor.u32 1.1754944e-38, %v689
    %v691 = vsel %vm688, %v690, %v686
    %v692 = vmul.f32 1.0, %v691
    %v693 = vtanh.pop %v673
    %v694 = vmul.f32 %v692, %v620
    %696 = vrot.lane.b32.xlu0 %v693, 64
    %v697 = vpop.permute.xlu0 %696
    %v699 = vmul.f32 %v692, %v697
    %701 = vrot.lane.b32.xlu0 %v699, 32
    %v702 = vpop.permute.xlu0 %701
    %v704 = vadd.f32 %v694, %v702
    %v705 = vtanh.pop %v704
    %707 = vrot.lane.b32.xlu0 %v705, 64
    %v708 = vpop.permute.xlu0 %707
    %v710 = vmul.f32 %v692, %v708
    %712 = vrot.lane.b32.xlu0 %v710, 32
    %v713 = vpop.permute.xlu0 %712
    %v714 = vsel %vm208, %v713, 0
    %716 = vmatpush.msra.mxu0 0.0
    %717 = vmatpush.msra.mxu0 0.0
    %718 = vmatpush.msra.mxu0 0.0
    %719 = vmatpush.msra.mxu0 0.0
    %720 = vmatpush.msra.mxu0 0.0
    %721 = vmatpush.msra.mxu0 0.0
    %722 = vmatpush.msra.mxu0 0.0
    %723 = vmatpush.msra.mxu0 0.0
    %724 = vmatpush.msra.mxu0 0.0
    %725 = vmatpush.msra.mxu0 0.0
    %726 = vmatpush.msra.mxu0 0.0
    %727 = vmatpush.msra.mxu0 0.0
    %728 = vmatpush.msra.mxu0 %v68
    %729 = vmatpush.msra.mxu0 %v66
    %730 = vmatpush.msra.mxu0 %v64
    %731 = vmatpush.msra.mxu0 %v62
    %732 = vmatmul.f32.gmra.mxu0 %v714
    %v733 = vpop.f32.mrf.mxu0
    %v734 = vadd.f32 0.0, %v733
    %735 = vdwg.mxu0
    %736 = vmatpush.msra.mxu0 0.0
    %737 = vmatpush.msra.mxu0 0.0
    %738 = vmatpush.msra.mxu0 0.0
    %739 = vmatpush.msra.mxu0 0.0
    %740 = vmatpush.msra.mxu0 0.0
    %741 = vmatpush.msra.mxu0 0.0
    %742 = vmatpush.msra.mxu0 0.0
    %743 = vmatpush.msra.mxu0 0.0
    %744 = vmatpush.msra.mxu0 0.0
    %745 = vmatpush.msra.mxu0 0.0
    %746 = vmatpush.msra.mxu0 0.0
    %747 = vmatpush.msra.mxu0 0.0
    %748 = vmatpush.msra.mxu0 %v69
    %749 = vmatpush.msra.mxu0 %v67
    %750 = vmatpush.msra.mxu0 %v65
    %751 = vmatpush.msra.mxu0 %v63
    %752 = vmatmul.f32.gmra.mxu0 %v714
    %v753 = vpop.f32.mrf.mxu0
    %v754 = vadd.f32 0.0, %v753
    %755 = vdwg.mxu0
    %v756 = vsel %vm197, %v734, %v754
    %v757 = vadd.f32 %v206, %v756
    %v758 = vxor.u32 %v757, 2147483648
    %v759 = vmul.f32 %v758, 1.442695
    %v760 = vpow.pop %v759
    %v761 = vadd.f32 %v760, 1.0
    %v762 = vrcp.pop %v761
    %v763 = vmul.f32 %v761, %v762
    %v764 = vsub.f32 1.0, %v763
    %v765 = vmul.f32 %v762, %v764
    %v766 = vadd.f32 %v762, %v765
    %vm767 = vweird.f32 %v761
    %vm768 = vweird.f32 %v762
    %vm769 = vmor %vm767, %vm768
    %v770 = vsel %vm769, %v762, %v766
    %v771 = vand.u32 2147483647, %v761
    %vm772 = vcmp.eq.f32.partialorder %v771, 8.507059e+37
    %v773 = vand.u32 %v761, 2147483648
    %v774 = vor.u32 1.1754944e-38, %v773
    %v775 = vsel %vm772, %v774, %v770
    %v776 = vmul.f32 1.0, %v775
    %v777 = vtanh.pop %v757
    %v778 = vmul.f32 %v776, %v704
    %780 = vrot.lane.b32.xlu0 %v777, 64
    %v781 = vpop.permute.xlu0 %780
    %v783 = vmul.f32 %v776, %v781
    %785 = vrot.lane.b32.xlu0 %v783, 32
    %v786 = vpop.permute.xlu0 %785
    %v788 = vadd.f32 %v778, %v786
    %v789 = vtanh.pop %v788
    %791 = vrot.lane.b32.xlu0 %v789, 64
    %v792 = vpop.permute.xlu0 %791
    %v794 = vmul.f32 %v776, %v792
    %796 = vrot.lane.b32.xlu0 %v794, 32
    %v797 = vpop.permute.xlu0 %796
    %v798 = vsel %vm208, %v797, 0
    %800 = vmatpush.msra.mxu0 0.0
    %801 = vmatpush.msra.mxu0 0.0
    %802 = vmatpush.msra.mxu0 0.0
    %803 = vmatpush.msra.mxu0 0.0
    %804 = vmatpush.msra.mxu0 0.0
    %805 = vmatpush.msra.mxu0 0.0
    %806 = vmatpush.msra.mxu0 0.0
    %807 = vmatpush.msra.mxu0 0.0
    %808 = vmatpush.msra.mxu0 0.0
    %809 = vmatpush.msra.mxu0 0.0
    %810 = vmatpush.msra.mxu0 0.0
    %811 = vmatpush.msra.mxu0 0.0
    %812 = vmatpush.msra.mxu0 %v68
    %813 = vmatpush.msra.mxu0 %v66
    %814 = vmatpush.msra.mxu0 %v64
    %815 = vmatpush.msra.mxu0 %v62
    %816 = vmatmul.f32.gmra.mxu0 %v798
    %v817 = vpop.f32.mrf.mxu0
    %v818 = vadd.f32 0.0, %v817
    %819 = vdwg.mxu0
    %820 = vmatpush.msra.mxu0 0.0
    %821 = vmatpush.msra.mxu0 0.0
    %822 = vmatpush.msra.mxu0 0.0
    %823 = vmatpush.msra.mxu0 0.0
    %824 = vmatpush.msra.mxu0 0.0
    %825 = vmatpush.msra.mxu0 0.0
    %826 = vmatpush.msra.mxu0 0.0
    %827 = vmatpush.msra.mxu0 0.0
    %828 = vmatpush.msra.mxu0 0.0
    %829 = vmatpush.msra.mxu0 0.0
    %830 = vmatpush.msra.mxu0 0.0
    %831 = vmatpush.msra.mxu0 0.0
    %832 = vmatpush.msra.mxu0 %v69
    %833 = vmatpush.msra.mxu0 %v67
    %834 = vmatpush.msra.mxu0 %v65
    %835 = vmatpush.msra.mxu0 %v63
    %836 = vmatmul.f32.gmra.mxu0 %v798
    %v837 = vpop.f32.mrf.mxu0
    %v838 = vadd.f32 0.0, %v837
    %839 = vdwg.mxu0
    %v840 = vsel %vm197, %v818, %v838
    %v841 = vadd.f32 %v207, %v840
    %v842 = vxor.u32 %v841, 2147483648
    %v843 = vmul.f32 %v842, 1.442695
    %v844 = vpow.pop %v843
    %v845 = vadd.f32 %v844, 1.0
    %v846 = vrcp.pop %v845
    %v847 = vmul.f32 %v845, %v846
    %v848 = vsub.f32 1.0, %v847
    %v849 = vmul.f32 %v846, %v848
    %v850 = vadd.f32 %v846, %v849
    %vm851 = vweird.f32 %v845
    %vm852 = vweird.f32 %v846
    %vm853 = vmor %vm851, %vm852
    %v854 = vsel %vm853, %v846, %v850
    %v855 = vand.u32 2147483647, %v845
    %vm856 = vcmp.eq.f32.partialorder %v855, 8.507059e+37
    %v857 = vand.u32 %v845, 2147483648
    %v858 = vor.u32 1.1754944e-38, %v857
    %v859 = vsel %vm856, %v858, %v854
    %v860 = vmul.f32 1.0, %v859
    %v861 = vtanh.pop %v841
    %v862 = vmul.f32 %v860, %v788
    %864 = vrot.lane.b32.xlu0 %v861, 64
    %v865 = vpop.permute.xlu0 %864
    %v867 = vmul.f32 %v860, %v865
    %869 = vrot.lane.b32.xlu0 %v867, 32
    %v870 = vpop.permute.xlu0 %869
    %v872 = vadd.f32 %v862, %v870
    %v873 = vtanh.pop %v872
    %875 = vrot.lane.b32.xlu0 %v873, 64
    %v876 = vpop.permute.xlu0 %875
    %v878 = vmul.f32 %v860, %v876
    %880 = vrot.lane.b32.xlu0 %v878, 32
    %v881 = vpop.permute.xlu0 %880
    %v883 = vrot.slane %v878, 4
    %884 = vrot.lane.b32.xlu0 %v883, 64
    %v885 = vpop.permute.xlu0 %884
    %v887 = vsel %vm208, %v881, %v885
    %v889 = vrot.slane %v887, 2
    %v891 = vmul.f32 %v887, %v889
    %v892 = vld [vmem:[#allocation7] sm:$0xff]
    %v893 = vld [vmem:[#allocation7 + $0x8] sm:$0xff]
    %v894 = vld [vmem:[#allocation7 + $0x10] sm:$0xff]
    %v895 = vld [vmem:[#allocation7 + $0x18] sm:$0xff]
    %v896 = vld [vmem:[#allocation7 + $0x20] sm:$0xff]
    %v897 = vld [vmem:[#allocation7 + $0x28] sm:$0xff]
    %v898 = vld [vmem:[#allocation7 + $0x30] sm:$0xff]
    %v899 = vld [vmem:[#allocation7 + $0x38] sm:$0xff]
    %v900 = vld [vmem:[#allocation7 + $0x40] sm:$0xff]
    %v901 = vperm.slane %v900, 0
    %vm902 = vcmask 523264
    %v904 = vsel %vm902, %v891, 0
    %906 = vmatpush.msra.mxu0 0.0
    %907 = vmatpush.msra.mxu0 0.0
    %908 = vmatpush.msra.mxu0 0.0
    %909 = vmatpush.msra.mxu0 0.0
    %910 = vmatpush.msra.mxu0 0.0
    %911 = vmatpush.msra.mxu0 0.0
    %912 = vmatpush.msra.mxu0 0.0
    %913 = vmatpush.msra.mxu0 0.0
    %914 = vmatpush.msra.mxu0 %v899
    %915 = vmatpush.msra.mxu0 %v898
    %916 = vmatpush.msra.mxu0 %v897
    %917 = vmatpush.msra.mxu0 %v896
    %918 = vmatpush.msra.mxu0 %v895
    %919 = vmatpush.msra.mxu0 %v894
    %920 = vmatpush.msra.mxu0 %v893
    %921 = vmatpush.msra.mxu0 %v892
    %922 = vmatmul.f32.gmra.mxu0 %v904
    %v923 = vpop.f32.mrf.mxu0
    %v924 = vadd.f32 %v901, %v923
    %925 = vdwg.mxu0
    %926 = vst [vmem:[#allocation8] sm:$0x3] %v924
    // Predicated region
    $region26: #{tpu_custom_call.1} parent=1 // pred_check
      _
    $region27: #{tpu_custom_call.1} parent=1 // pred_check_branch
      %928 = sbr.rel (0) target = $region29
    $region28: #{tpu_custom_call.1} parent=1 // pred_region
      %930 = vsyncadd [#allocation4], 0
      %s932 = sshll.u32 [#allocation8], 4
      %s933 = int_to_ptr.vmem [resolvable:$true] %s932
      %s934 = sshll.u32 %s3, 4
      %s935 = int_to_ptr.hbm [resolvable:$true] %s934
      %937 = dma.vmem_to_hbm [thread:$0]  %s933, 32, %s935, [#allocation4]
    $region29: #{tpu_custom_call.1} parent=1 // pred_fallthru
      _
    // Predicated region
    $region30: #{tpu_custom_call.1} parent=1 // pred_check
      _
    $region31: #{tpu_custom_call.1} parent=1 // pred_check_branch
      %939 = sbr.rel (0) target = $region33
    $region32: #{tpu_custom_call.1} parent=1 // pred_region
      %941 = dma.done [#allocation4], 32
    $region33: #{tpu_custom_call.1} parent=1 // pred_fallthru
      _
    %942 = vsyncpa [#allocation3], 1
    %943 = vsyncpa [#allocation6], 1
    %944 = vsyncpa [#allocation4], 1

</llo_original>
